<compile_context>
chip_gen: v7x
topology: tpu7x:2x2x1
jax: 0.10.0
libtpu: 0.0.40
codegen_flags: <defaults>
</compile_context>

<pallas_src>
import functools

import jax
import jax.numpy as jnp
from jax import lax
from jax.experimental import pallas as pl
from jax.experimental.pallas import tpu as pltpu


def _pick_tile(s, target):
    """Largest tile <= target that is either == s or a multiple-of-8 divisor of s."""
    if s <= target:
        return s
    t = (target // 8) * 8
    for cand in range(t, 0, -8):
        if s % cand == 0:
            return cand
    return s


def _flash_attention_kernel(evlen_ref,          # (B,) int32 in SMEM (scalar prefetch)
                            xq_ref,             # (1, tq, D) bf16   (query rows)
                            xkv_ref,            # (1, tk, D) bf16   (key/value rows)
                            wq_ref, bq_ref,     # (D, D) bf16 (scale folded), (1, D) f32
                            wkv_ref, bkv_ref,   # (D, 2D) bf16 fused K|V,     (1, 2D) f32
                            o_ref,              # (1, tq, D) f32
                            q_scr,              # (tq, D) bf16
                            m_scr, l_scr,       # (tq, 1) f32 running max / denom
                            acc_scr,            # (tq, D) f32 output accumulator
                            *, tq, tk, d):
    b = pl.program_id(0)
    qi = pl.program_id(1)
    ki = pl.program_id(2)
    nk = pl.num_programs(2)

    evlen = evlen_ref[b]

    @pl.when(ki == 0)
    def _init():
        # Query projection once per (b, q-tile); 1/sqrt(D) already folded into wq/bq.
        q = jnp.dot(xq_ref[0], wq_ref[...],
                    preferred_element_type=jnp.float32) + bq_ref[0]
        q_scr[...] = q.astype(jnp.bfloat16)
        m_scr[...] = jnp.full_like(m_scr, -jnp.inf)
        l_scr[...] = jnp.zeros_like(l_scr)
        acc_scr[...] = jnp.zeros_like(acc_scr)

    # Fused K/V projection for this kv tile: (tk, 2D) with f32 accumulation.
    kv = jnp.dot(xkv_ref[0], wkv_ref[...],
                 preferred_element_type=jnp.float32) + bkv_ref[0]
    k = kv[:, :d].astype(jnp.bfloat16)
    v = kv[:, d:].astype(jnp.bfloat16)

    # Scores (tq, tk): contract the feature dims directly -- no in-kernel transpose.
    s = lax.dot_general(q_scr[...], k,
                        dimension_numbers=(((1,), (1,)), ((), ())),
                        preferred_element_type=jnp.float32)

    # Event-length mask (row < len) & (col < len); masked -> -1e9 like the reference.
    row = qi * tq + lax.broadcasted_iota(jnp.int32, (tq, tk), 0)
    col = ki * tk + lax.broadcasted_iota(jnp.int32, (tq, tk), 1)
    s = jnp.where((row < evlen) & (col < evlen), s, jnp.float32(-1e9))

    # Online softmax update (f32).
    m_prev = m_scr[...]
    m_new = jnp.maximum(m_prev, jnp.max(s, axis=-1, keepdims=True))
    alpha = jnp.exp(m_prev - m_new)
    p = jnp.exp(s - m_new)
    l_scr[...] = alpha * l_scr[...] + jnp.sum(p, axis=-1, keepdims=True)
    acc_scr[...] = alpha * acc_scr[...] + jnp.dot(
        p.astype(jnp.bfloat16), v, preferred_element_type=jnp.float32)
    m_scr[...] = m_new

    @pl.when(ki == nk - 1)
    def _finalize():
        o_ref[0] = (acc_scr[...]
                    * pl.reciprocal(l_scr[...], approx=True)).astype(o_ref.dtype)


def innocent_attention(x, params, event_length=None, *, tq=None, tk=None):
    """x: (B, S, D) float32; event_length: optional (B,) int32."""
    B, S, D = x.shape
    if event_length is None:
        event_length = jnp.full((B,), S, dtype=jnp.int32)
    event_length = event_length.astype(jnp.int32)

    if tq is None:
        tq = _pick_tile(S, 256)
    if tk is None:
        tk = _pick_tile(S, 512)
    nq, nk = S // tq, S // tk

    inv_scale = 1.0 / float(D) ** 0.5

    # Pre-transpose weights (PyTorch stores (out, in)); fold 1/sqrt(D) into the Q
    # projection; fuse K and V projections into one (D, 2D) matmul. bf16 for MXU.
    wq = (params["wq"].T * inv_scale).astype(jnp.bfloat16)                 # (D, D)
    bq = (params["bq"] * inv_scale).reshape(1, D).astype(jnp.float32)      # (1, D)
    wkv = jnp.concatenate([params["wk"].T, params["wv"].T],
                          axis=1).astype(jnp.bfloat16)                     # (D, 2D)
    bkv = jnp.concatenate([params["bk"], params["bv"]]
                          ).reshape(1, 2 * D).astype(jnp.float32)          # (1, 2D)

    x_bf16 = x.astype(jnp.bfloat16)

    kernel = functools.partial(_flash_attention_kernel, tq=tq, tk=tk, d=D)

    grid_spec = pltpu.PrefetchScalarGridSpec(
        num_scalar_prefetch=1,
        grid=(B, nq, nk),
        in_specs=[
            pl.BlockSpec((1, tq, D), lambda b, qi, ki, ev: (b, qi, 0)),   # x (queries)
            pl.BlockSpec((1, tk, D), lambda b, qi, ki, ev: (b, ki, 0)),   # x (keys/vals)
            pl.BlockSpec((D, D),     lambda b, qi, ki, ev: (0, 0)),       # wq (scaled, T)
            pl.BlockSpec((1, D),     lambda b, qi, ki, ev: (0, 0)),       # bq
            pl.BlockSpec((D, 2 * D), lambda b, qi, ki, ev: (0, 0)),       # wkv (T, fused)
            pl.BlockSpec((1, 2 * D), lambda b, qi, ki, ev: (0, 0)),       # bkv
        ],
        out_specs=pl.BlockSpec((1, tq, D), lambda b, qi, ki, ev: (b, qi, 0)),
        scratch_shapes=[
            pltpu.VMEM((tq, D), jnp.bfloat16),   # q tile
            pltpu.VMEM((tq, 1), jnp.float32),    # running max
            pltpu.VMEM((tq, 1), jnp.float32),    # running denom
            pltpu.VMEM((tq, D), jnp.float32),    # output accumulator
        ],
    )

    flops = 2 * B * (3 * S * D * D + 2 * S * S * D)
    bytes_accessed = (2 * B * S * D * 2     # x streamed twice (bf16)
                      + 3 * D * D * 2       # packed weights (bf16)
                      + 3 * D * 4           # biases (f32)
                      + B * S * D * 4)      # output (f32)
    cost = pl.CostEstimate(flops=flops, transcendentals=B * S * S,
                           bytes_accessed=bytes_accessed)

    return pl.pallas_call(
        kernel,
        out_shape=jax.ShapeDtypeStruct((B, S, D), jnp.float32),
        grid_spec=grid_spec,
        compiler_params=pltpu.CompilerParams(
            dimension_semantics=("parallel", "parallel", "arbitrary")),
        cost_estimate=cost,
    )(event_length, x_bf16, x_bf16, wq, bq, wkv, bkv)


def _reference(x, params, event_length=None):
    """Pure-JAX f32 reference mirroring the PyTorch forward (eval mode)."""
    B, S, D = x.shape
    q = x @ params["wq"].T + params["bq"]
    k = x @ params["wk"].T + params["bk"]
    v = x @ params["wv"].T + params["bv"]
    scores = jnp.einsum("bsd,btd->bst", q, k) / jnp.sqrt(jnp.float32(D))
    if event_length is not None:
        row = jnp.arange(S).reshape(1, -1, 1)
        col = jnp.arange(S).reshape(1, 1, -1)
        ev = event_length.reshape(-1, 1, 1)
        mask = (row < ev) & (col < ev)
        scores = jnp.where(mask, scores, jnp.float32(-1e9))
    attn = jax.nn.softmax(scores, axis=-1)
    return jnp.einsum("bst,btd->bsd", attn, v)


if __name__ == "__main__":
    key = jax.random.PRNGKey(0)
    B, S, D = 2, 8, 32

    keys = jax.random.split(key, 9)
    bound = 1.0 / jnp.sqrt(jnp.float32(D))
    params = {
        "wq": jax.random.uniform(keys[0], (D, D), jnp.float32, -bound, bound),
        "bq": jax.random.uniform(keys[1], (D,), jnp.float32, -bound, bound),
        "wk": jax.random.uniform(keys[2], (D, D), jnp.float32, -bound, bound),
        "bk": jax.random.uniform(keys[3], (D,), jnp.float32, -bound, bound),
        "wv": jax.random.uniform(keys[4], (D, D), jnp.float32, -bound, bound),
        "bv": jax.random.uniform(keys[5], (D,), jnp.float32, -bound, bound),
    }

    x = jax.random.normal(keys[6], (B, S, D), jnp.float32)
    event_length = jnp.array([5, 8], dtype=jnp.int32)

    out = jax.block_until_ready(innocent_attention(x, params, event_length))
    ref = _reference(x, params, event_length)
    assert out.shape == (B, S, D)
    # bf16 MXU inputs -> looser tolerance than pure f32.
    assert jnp.allclose(out, ref, atol=3e-2, rtol=3e-2), (
        f"max abs err {jnp.max(jnp.abs(out - ref))}")

    # also exercise the event_length=None path
    out2 = jax.block_until_ready(innocent_attention(x, params, None))
    ref2 = _reference(x, params, None)
    assert jnp.allclose(out2, ref2, atol=3e-2, rtol=3e-2), (
        f"max abs err {jnp.max(jnp.abs(out2 - ref2))}")

    print("KERNEL_OK")
</pallas_src>

<mosaic_0001>
module attributes {stable_mosaic.version = 11 : i64} {
  func.func @_flash_attention_kernel(%arg0: i32, %arg1: i32, %arg2: i32, %arg3: memref<2xi32, #tpu.memory_space<smem>>, %arg4: memref<1x8x32xbf16, #tpu.memory_space<vmem>>, %arg5: memref<1x8x32xbf16, #tpu.memory_space<vmem>>, %arg6: memref<32x32xbf16, #tpu.memory_space<vmem>>, %arg7: memref<1x32xf32, #tpu.memory_space<vmem>>, %arg8: memref<32x64xbf16, #tpu.memory_space<vmem>>, %arg9: memref<1x64xf32, #tpu.memory_space<vmem>>, %arg10: memref<1x8x32xf32, #tpu.memory_space<vmem>>, %arg11: memref<8x32xbf16, #tpu.memory_space<vmem>>, %arg12: memref<8x1xf32, #tpu.memory_space<vmem>>, %arg13: memref<8x1xf32, #tpu.memory_space<vmem>>, %arg14: memref<8x32xf32, #tpu.memory_space<vmem>>) attributes {dimension_semantics = [#tpu.dimension_semantics<parallel>, #tpu.dimension_semantics<parallel>, #tpu.dimension_semantics<arbitrary>], iteration_bounds = array<i64: 2, 1, 1>, scalar_prefetch = 1 : i64, scratch_operands = 4 : i64, tpu.core_type = #tpu.core_type<tc>, window_params = [{transform_indices = @transform_0, window_bounds = array<i64: 1, 8, 32>}, {transform_indices = @transform_1, window_bounds = array<i64: 1, 8, 32>}, {pipeline_mode = #tpu.pipeline_mode<synchronous>, transform_indices = @transform_2, window_bounds = array<i64: 32, 32>}, {pipeline_mode = #tpu.pipeline_mode<synchronous>, transform_indices = @transform_3, window_bounds = array<i64: 1, 32>}, {pipeline_mode = #tpu.pipeline_mode<synchronous>, transform_indices = @transform_4, window_bounds = array<i64: 32, 64>}, {pipeline_mode = #tpu.pipeline_mode<synchronous>, transform_indices = @transform_5, window_bounds = array<i64: 1, 64>}, {transform_indices = @transform_6, window_bounds = array<i64: 1, 8, 32>}]} {
    %0 = arith.index_cast %arg0 : i32 to index
    %1 = memref.load %arg3[%0] : memref<2xi32, #tpu.memory_space<smem>>
    %c0_i32 = arith.constant 0 : i32
    %2 = arith.cmpi eq, %arg2, %c0_i32 : i32
    %3 = arith.extui %2 : i1 to i32
    %c0_i32_0 = arith.constant 0 : i32
    %4 = arith.cmpi ne, %3, %c0_i32_0 : i32
    scf.if %4 {
      %c0_29 = arith.constant 0 : index
      %c0_30 = arith.constant 0 : index
      %c0_31 = arith.constant 0 : index
      %61 = vector.load %arg4[%c0_29, %c0_30, %c0_31] : memref<1x8x32xbf16, #tpu.memory_space<vmem>>, vector<1x8x32xbf16>
      %62 = vector.shape_cast %61 : vector<1x8x32xbf16> to vector<8x32xbf16>
      %c0_32 = arith.constant 0 : index
      %c0_33 = arith.constant 0 : index
      %63 = vector.load %arg6[%c0_32, %c0_33] : memref<32x32xbf16, #tpu.memory_space<vmem>>, vector<32x32xbf16>
      %cst_34 = arith.constant dense<0.000000e+00> : vector<8x32xf32>
      %64 = tpu.matmul %62, %63, %cst_34 {dimension_numbers = #tpu.dot_dimension_numbers<[1], [0], [0], [1], [0, 0, 1, 1], [], []>} : vector<8x32xbf16>, vector<32x32xbf16>, vector<8x32xf32> -> vector<8x32xf32>
      %c0_35 = arith.constant 0 : index
      %c0_36 = arith.constant 0 : index
      %65 = vector.load %arg7[%c0_35, %c0_36] : memref<1x32xf32, #tpu.memory_space<vmem>>, vector<1x32xf32>
      %66 = vector.shape_cast %65 : vector<1x32xf32> to vector<32xf32>
      %67 = vector.shape_cast %66 : vector<32xf32> to vector<1x32xf32>
      %68 = vector.broadcast %67 : vector<1x32xf32> to vector<8x32xf32>
      %69 = arith.addf %64, %68 : vector<8x32xf32>
      %70 = arith.truncf %69 : vector<8x32xf32> to vector<8x32xbf16>
      %c0_37 = arith.constant 0 : index
      %c0_38 = arith.constant 0 : index
      %71 = vector.load %arg11[%c0_37, %c0_38] : memref<8x32xbf16, #tpu.memory_space<vmem>>, vector<8x32xbf16>
      tpu.vector_store %arg11[%c0_37, %c0_38], %70 {strides = array<i32>} : memref<8x32xbf16, #tpu.memory_space<vmem>>, vector<8x32xbf16>,
      %cst_39 = arith.constant 0xFF800000 : f32
      %72 = vector.broadcast %cst_39 : f32 to vector<8x1xf32>
      %c0_40 = arith.constant 0 : index
      %c0_41 = arith.constant 0 : index
      %73 = vector.load %arg12[%c0_40, %c0_41] : memref<8x1xf32, #tpu.memory_space<vmem>>, vector<8x1xf32>
      tpu.vector_store %arg12[%c0_40, %c0_41], %72 {strides = array<i32>} : memref<8x1xf32, #tpu.memory_space<vmem>>, vector<8x1xf32>,
      %cst_42 = arith.constant 0.000000e+00 : f32
      %74 = vector.broadcast %cst_42 : f32 to vector<8x1xf32>
      %c0_43 = arith.constant 0 : index
      %c0_44 = arith.constant 0 : index
      %75 = vector.load %arg13[%c0_43, %c0_44] : memref<8x1xf32, #tpu.memory_space<vmem>>, vector<8x1xf32>
      tpu.vector_store %arg13[%c0_43, %c0_44], %74 {strides = array<i32>} : memref<8x1xf32, #tpu.memory_space<vmem>>, vector<8x1xf32>,
      %cst_45 = arith.constant 0.000000e+00 : f32
      %76 = vector.broadcast %cst_45 : f32 to vector<8x32xf32>
      %c0_46 = arith.constant 0 : index
      %c0_47 = arith.constant 0 : index
      %77 = vector.load %arg14[%c0_46, %c0_47] : memref<8x32xf32, #tpu.memory_space<vmem>>, vector<8x32xf32>
      tpu.vector_store %arg14[%c0_46, %c0_47], %76 {strides = array<i32>} : memref<8x32xf32, #tpu.memory_space<vmem>>, vector<8x32xf32>,
    } else {
    }
    %c0 = arith.constant 0 : index
    %c0_1 = arith.constant 0 : index
    %c0_2 = arith.constant 0 : index
    %5 = vector.load %arg5[%c0, %c0_1, %c0_2] : memref<1x8x32xbf16, #tpu.memory_space<vmem>>, vector<1x8x32xbf16>
    %6 = vector.shape_cast %5 : vector<1x8x32xbf16> to vector<8x32xbf16>
    %c0_3 = arith.constant 0 : index
    %c0_4 = arith.constant 0 : index
    %7 = vector.load %arg8[%c0_3, %c0_4] : memref<32x64xbf16, #tpu.memory_space<vmem>>, vector<32x64xbf16>
    %cst = arith.constant dense<0.000000e+00> : vector<8x64xf32>
    %8 = tpu.matmul %6, %7, %cst {dimension_numbers = #tpu.dot_dimension_numbers<[1], [0], [0], [1], [0, 0, 1, 1], [], []>} : vector<8x32xbf16>, vector<32x64xbf16>, vector<8x64xf32> -> vector<8x64xf32>
    %c0_5 = arith.constant 0 : index
    %c0_6 = arith.constant 0 : index
    %9 = vector.load %arg9[%c0_5, %c0_6] : memref<1x64xf32, #tpu.memory_space<vmem>>, vector<1x64xf32>
    %10 = vector.shape_cast %9 : vector<1x64xf32> to vector<64xf32>
    %11 = vector.shape_cast %10 : vector<64xf32> to vector<1x64xf32>
    %12 = vector.broadcast %11 : vector<1x64xf32> to vector<8x64xf32>
    %13 = arith.addf %8, %12 : vector<8x64xf32>
    %14 = vector.extract_strided_slice %13 {offsets = [0, 0], sizes = [8, 32], strides = [1, 1]} : vector<8x64xf32> to vector<8x32xf32>
    %15 = arith.truncf %14 : vector<8x32xf32> to vector<8x32xbf16>
    %16 = vector.extract_strided_slice %13 {offsets = [0, 32], sizes = [8, 32], strides = [1, 1]} : vector<8x64xf32> to vector<8x32xf32>
    %17 = arith.truncf %16 : vector<8x32xf32> to vector<8x32xbf16>
    %c0_7 = arith.constant 0 : index
    %c0_8 = arith.constant 0 : index
    %18 = vector.load %arg11[%c0_7, %c0_8] : memref<8x32xbf16, #tpu.memory_space<vmem>>, vector<8x32xbf16>
    %cst_9 = arith.constant dense<0.000000e+00> : vector<8x8xf32>
    %19 = tpu.matmul %18, %15, %cst_9 {dimension_numbers = #tpu.dot_dimension_numbers<[1], [1], [0], [0], [0, 0, 1, 0], [], []>} : vector<8x32xbf16>, vector<8x32xbf16>, vector<8x8xf32> -> vector<8x8xf32>
    %c8_i32 = arith.constant 8 : i32
    %20 = arith.muli %arg1, %c8_i32 : i32
    %21 = tpu.iota {dimensions = array<i32: 0>} : vector<8x8xi32>
    %22 = vector.broadcast %20 : i32 to vector<8x8xi32>
    %23 = arith.addi %22, %21 : vector<8x8xi32>
    %c8_i32_10 = arith.constant 8 : i32
    %24 = arith.muli %arg2, %c8_i32_10 : i32
    %25 = tpu.iota {dimensions = array<i32: 1>} : vector<8x8xi32>
    %26 = vector.broadcast %24 : i32 to vector<8x8xi32>
    %27 = arith.addi %26, %25 : vector<8x8xi32>
    %28 = vector.broadcast %1 : i32 to vector<8x8xi32>
    %29 = arith.cmpi slt, %23, %28 : vector<8x8xi32>
    %30 = vector.broadcast %1 : i32 to vector<8x8xi32>
    %31 = arith.cmpi slt, %27, %30 : vector<8x8xi32>
    %32 = arith.andi %29, %31 : vector<8x8xi1>
    %cst_11 = arith.constant -1.000000e+09 : f32
    %33 = vector.broadcast %cst_11 : f32 to vector<8x8xf32>
    %34 = arith.select %32, %19, %33 : vector<8x8xi1>, vector<8x8xf32>
    %c0_12 = arith.constant 0 : index
    %c0_13 = arith.constant 0 : index
    %35 = vector.load %arg12[%c0_12, %c0_13] : memref<8x1xf32, #tpu.memory_space<vmem>>, vector<8x1xf32>
    %cst_14 = arith.constant dense<0xFF800000> : vector<8xf32>
    %36 = vector.multi_reduction <maximumf>, %34, %cst_14 [1] : vector<8x8xf32> to vector<8xf32>
    %37 = vector.shape_cast %36 : vector<8xf32> to vector<8x1xf32>
    %38 = arith.maximumf %35, %37 : vector<8x1xf32>
    %39 = arith.subf %35, %38 : vector<8x1xf32>
    %40 = math.exp %39 : vector<8x1xf32>
    %41 = vector.broadcast %38 : vector<8x1xf32> to vector<8x8xf32>
    %42 = arith.subf %34, %41 : vector<8x8xf32>
    %43 = math.exp %42 : vector<8x8xf32>
    %c0_15 = arith.constant 0 : index
    %c0_16 = arith.constant 0 : index
    %44 = vector.load %arg13[%c0_15, %c0_16] : memref<8x1xf32, #tpu.memory_space<vmem>>, vector<8x1xf32>
    %45 = arith.mulf %40, %44 : vector<8x1xf32>
    %cst_17 = arith.constant dense<0.000000e+00> : vector<8xf32>
    %46 = vector.multi_reduction <add>, %43, %cst_17 [1] : vector<8x8xf32> to vector<8xf32>
    %47 = vector.shape_cast %46 : vector<8xf32> to vector<8x1xf32>
    %48 = arith.addf %45, %47 : vector<8x1xf32>
    %c0_18 = arith.constant 0 : index
    %c0_19 = arith.constant 0 : index
    %49 = vector.load %arg13[%c0_18, %c0_19] : memref<8x1xf32, #tpu.memory_space<vmem>>, vector<8x1xf32>
    tpu.vector_store %arg13[%c0_18, %c0_19], %48 {strides = array<i32>} : memref<8x1xf32, #tpu.memory_space<vmem>>, vector<8x1xf32>,
    %c0_20 = arith.constant 0 : index
    %c0_21 = arith.constant 0 : index
    %50 = vector.load %arg14[%c0_20, %c0_21] : memref<8x32xf32, #tpu.memory_space<vmem>>, vector<8x32xf32>
    %51 = vector.broadcast %40 : vector<8x1xf32> to vector<8x32xf32>
    %52 = arith.mulf %51, %50 : vector<8x32xf32>
    %53 = arith.truncf %43 : vector<8x8xf32> to vector<8x8xbf16>
    %cst_22 = arith.constant dense<0.000000e+00> : vector<8x32xf32>
    %54 = tpu.matmul %53, %17, %cst_22 {dimension_numbers = #tpu.dot_dimension_numbers<[1], [0], [0], [1], [0, 0, 1, 1], [], []>} : vector<8x8xbf16>, vector<8x32xbf16>, vector<8x32xf32> -> vector<8x32xf32>
    %55 = arith.addf %52, %54 : vector<8x32xf32>
    %c0_23 = arith.constant 0 : index
    %c0_24 = arith.constant 0 : index
    %56 = vector.load %arg14[%c0_23, %c0_24] : memref<8x32xf32, #tpu.memory_space<vmem>>, vector<8x32xf32>
    tpu.vector_store %arg14[%c0_23, %c0_24], %55 {strides = array<i32>} : memref<8x32xf32, #tpu.memory_space<vmem>>, vector<8x32xf32>,
    %c0_25 = arith.constant 0 : index
    %c0_26 = arith.constant 0 : index
    %57 = vector.load %arg12[%c0_25, %c0_26] : memref<8x1xf32, #tpu.memory_space<vmem>>, vector<8x1xf32>
    tpu.vector_store %arg12[%c0_25, %c0_26], %38 {strides = array<i32>} : memref<8x1xf32, #tpu.memory_space<vmem>>, vector<8x1xf32>,
    %c0_i32_27 = arith.constant 0 : i32
    %58 = arith.cmpi eq, %arg2, %c0_i32_27 : i32
    %59 = arith.extui %58 : i1 to i32
    %c0_i32_28 = arith.constant 0 : i32
    %60 = arith.cmpi ne, %59, %c0_i32_28 : i32
    scf.if %60 {
      %c0_29 = arith.constant 0 : index
      %c0_30 = arith.constant 0 : index
      %61 = vector.load %arg14[%c0_29, %c0_30] : memref<8x32xf32, #tpu.memory_space<vmem>>, vector<8x32xf32>
      %c0_31 = arith.constant 0 : index
      %c0_32 = arith.constant 0 : index
      %62 = vector.load %arg13[%c0_31, %c0_32] : memref<8x1xf32, #tpu.memory_space<vmem>>, vector<8x1xf32>
      %63 = tpu.reciprocal %62 {approx = true} : vector<8x1xf32> -> vector<8x1xf32>
      %64 = vector.broadcast %63 : vector<8x1xf32> to vector<8x32xf32>
      %65 = arith.mulf %61, %64 : vector<8x32xf32>
      %c0_33 = arith.constant 0 : index
      %c0_34 = arith.constant 0 : index
      %c0_35 = arith.constant 0 : index
      %66 = vector.load %arg10[%c0_33, %c0_34, %c0_35] : memref<1x8x32xf32, #tpu.memory_space<vmem>>, vector<1x8x32xf32>
      %67 = vector.shape_cast %66 : vector<1x8x32xf32> to vector<8x32xf32>
      %68 = vector.shape_cast %65 : vector<8x32xf32> to vector<1x8x32xf32>
      tpu.vector_store %arg10[%c0_33, %c0_34, %c0_35], %68 {strides = array<i32>} : memref<1x8x32xf32, #tpu.memory_space<vmem>>, vector<1x8x32xf32>,
    } else {
    }
    return
  }
  func.func @transform_0(%arg0: i32, %arg1: i32, %arg2: i32, %arg3: memref<2xi32, #tpu.memory_space<smem>>) -> (i32, i32, i32) {
    %c0_i32 = arith.constant 0 : i32
    %c0_i32_0 = arith.constant 0 : i32
    return %arg0, %arg1, %c0_i32 : i32, i32, i32
  }
  func.func @transform_1(%arg0: i32, %arg1: i32, %arg2: i32, %arg3: memref<2xi32, #tpu.memory_space<smem>>) -> (i32, i32, i32) {
    %c0_i32 = arith.constant 0 : i32
    %c0_i32_0 = arith.constant 0 : i32
    return %arg0, %arg2, %c0_i32 : i32, i32, i32
  }
  func.func @transform_2(%arg0: i32, %arg1: i32, %arg2: i32, %arg3: memref<2xi32, #tpu.memory_space<smem>>) -> (i32, i32) {
    %c0_i32 = arith.constant 0 : i32
    %c0_i32_0 = arith.constant 0 : i32
    %c0_i32_1 = arith.constant 0 : i32
    return %c0_i32, %c0_i32_0 : i32, i32
  }
  func.func @transform_3(%arg0: i32, %arg1: i32, %arg2: i32, %arg3: memref<2xi32, #tpu.memory_space<smem>>) -> (i32, i32) {
    %c0_i32 = arith.constant 0 : i32
    %c0_i32_0 = arith.constant 0 : i32
    %c0_i32_1 = arith.constant 0 : i32
    return %c0_i32, %c0_i32_0 : i32, i32
  }
  func.func @transform_4(%arg0: i32, %arg1: i32, %arg2: i32, %arg3: memref<2xi32, #tpu.memory_space<smem>>) -> (i32, i32) {
    %c0_i32 = arith.constant 0 : i32
    %c0_i32_0 = arith.constant 0 : i32
    %c0_i32_1 = arith.constant 0 : i32
    return %c0_i32, %c0_i32_0 : i32, i32
  }
  func.func @transform_5(%arg0: i32, %arg1: i32, %arg2: i32, %arg3: memref<2xi32, #tpu.memory_space<smem>>) -> (i32, i32) {
    %c0_i32 = arith.constant 0 : i32
    %c0_i32_0 = arith.constant 0 : i32
    %c0_i32_1 = arith.constant 0 : i32
    return %c0_i32, %c0_i32_0 : i32, i32
  }
  func.func @transform_6(%arg0: i32, %arg1: i32, %arg2: i32, %arg3: memref<2xi32, #tpu.memory_space<smem>>) -> (i32, i32, i32) {
    %c0_i32 = arith.constant 0 : i32
    %c0_i32_0 = arith.constant 0 : i32
    return %arg0, %arg1, %c0_i32 : i32, i32, i32
  }
}

</mosaic_0001>

<llo_original>
// kernel: tpu_custom_call.1
$region0: #{tpu_custom_call.1}
  #allocation0 [shape = 'u32[]', space=smem, size = 0x4, offset = 0x4, fixed_abs, tag = 'smem constant byte address 0x4 - core index']
  #allocation1 [shape = 'u32[144,128]{1,0:T(1,128)}', space=vmem, size = 0x12000, scoped, tag = 'internal scratch']
  #allocation2 [shape = 'bf16[8,32]{1,0:T(8,128)(2,1)}', space=vmem, size = 0x800, scoped, tag = 'scratch operand']
  #allocation3 [shape = 'f32[8,1]{1,0:T(8,128)}', space=vmem, size = 0x1000, scoped, tag = 'scratch operand']
  #allocation4 [shape = 'f32[8,1]{1,0:T(8,128)}', space=vmem, size = 0x1000, scoped, tag = 'scratch operand']
  #allocation5 [shape = 'f32[8,32]{1,0:T(8,128)}', space=vmem, size = 0x1000, scoped, tag = 'scratch operand']
  #allocation6 [shape = 's32[1]{0}', space=sflag, size = 0x4, scoped, tag = 'scoped memory for tpu_custom_call.1']
  #allocation7 [shape = 'u8[512]{0}', space=smem, size = 0x200, scoped, tag = 'prefetched SMEM operand 0']
  %s0 = inlined_call_operand.hbm [shape: s32[2], index: 0, kind: input, shape index: {}]
  %s1 = inlined_call_operand.hbm [shape: bf16[2,8,32], index: 1, kind: input, shape index: {}]
  %s2 = inlined_call_operand.hbm [shape: bf16[2,8,32], index: 2, kind: input, shape index: {}]
  %s3 = inlined_call_operand.hbm [shape: bf16[32,32], index: 3, kind: input, shape index: {}]
  %s4 = inlined_call_operand.vmem [shape: f32[1,32], index: 4, kind: input, shape index: {}]
  %s5 = inlined_call_operand.vmem [shape: bf16[32,64], index: 5, kind: input, shape index: {}]
  %s6 = inlined_call_operand.vmem [shape: f32[1,64], index: 6, kind: input, shape index: {}]
  %s7 = inlined_call_operand.hbm [shape: f32[2,8,32], index: 7, kind: output, shape index: {}]
  %s8 = sld [smem:[#allocation0]]
  $region77: #{tpu_custom_call.1} parent=0
    _
  %s10 = ssub.s32 1, %s8
  %s11 = scalar_select 0, %s10, %s8
  %13 = dma.hbm_to_smem %s0, 16, [#allocation7], [#allocation6]
  %14 = dma.done [#allocation6], 16
  %15 = sfence
  $region1: #{tpu_custom_call.1} parent=0
    #allocation8 [shape = 'u8[4096]{0}', space=vmem, size = 0x1000, scoped, tag = 'input window, operand 1']
    #allocation9 [shape = 's32[2]{0}', space=sflag, size = 0x8, scoped, tag = 'scoped memory for tpu_custom_call.1']
    #allocation10 [shape = 's32[2]{0}', space=sflag, size = 0x8, scoped, tag = 'scoped memory for tpu_custom_call.1']
    #allocation11 [shape = 'u8[4096]{0}', space=vmem, size = 0x1000, scoped, tag = 'input window, operand 2']
    #allocation12 [shape = 's32[2]{0}', space=sflag, size = 0x8, scoped, tag = 'scoped memory for tpu_custom_call.1']
    #allocation13 [shape = 'u8[8192]{0}', space=vmem, size = 0x2000, scoped, tag = 'input window, operand 3, single buffered']
    #allocation14 [shape = 'u8[8192]{0}', space=vmem, size = 0x2000, scoped, tag = 'output window, operand 0']
    %16 = vsyncpa [#allocation9], 0
    %s17 = scalar_lea.sflag [#allocation9], 1
    %18 = vsyncpa %s17, 0
    %19 = vsyncpa [#allocation12], 0
    %s20 = scalar_lea.sflag [#allocation12], 1
    %21 = vsyncpa %s20, 0
    %22 = vsyncpa [#allocation10], 0
    %s23 = scalar_lea.sflag [#allocation10], 1
    %24 = vsyncpa %s23, 0
    loop: start=0, step=1, limit=4
    $region2: #{tpu_custom_call.1} parent=1 // loop_pre_header
      _
    $region3: #{tpu_custom_call.1} parent=1 // loop_header
      %s26 = sphi 0, %s30
      %p27 = scmp.ge.s32.totalorder %s26, 4
      %s33 = sphi 0, %s52
      %s34 = sphi 0, %s48
      %s35 = sphi 0, %s44
      %s36 = sphi 0, %s33
      %s37 = sphi 0, %s34
      %s38 = sphi 0, %s35
      %s39 = sphi 0, %s36
      %s40 = sphi 0, %s37
      %s41 = sphi 0, %s38
      %s57 = sphi 0, %s59
      %s60 = sphi 0, %s57
      %s61 = sphi 0, %s60
      %s77 = sphi 0, %s61
      %s85 = sphi 0, %s87
      %s88 = sphi 0, %s85
      %s89 = sphi 0, %s88
      %s105 = sphi 0, %s89
      %s109 = sphi 0, %s109
      %s111 = sphi 0, %s109
      %s112 = sphi 0, %s111
      %s126 = sphi 0, %s112
      %s130 = sphi 0, %s130
      %s132 = sphi 0, %s130
      %s133 = sphi 0, %s132
      %s147 = sphi 0, %s133
      %s151 = sphi 0, %s151
      %s153 = sphi 0, %s151
      %s154 = sphi 0, %s153
      %s168 = sphi 0, %s154
      %s172 = sphi 0, %s172
      %s174 = sphi 0, %s172
      %s175 = sphi 0, %s174
      %s189 = sphi 0, %s175
      %s197 = sphi 0, %s199
      %s200 = sphi 0, %s197
      %s201 = sphi 0, %s200
      %s217 = sphi 0, %s201
    $region4: #{tpu_custom_call.1} parent=1 // loop_header_branch
      %29 = sbr.rel (%p27) target = $region8
    $region5: #{tpu_custom_call.1} parent=1 // loop_body
      %s31 = ssub.s32 %s26, 1
      %s32 = ssub.s32 %s26, 2
      %s42 = sadd.s32 1, %s35
      %p43 = scmp.ge.s32.totalorder %s42, 1
      %s44 = scalar_select %p43, 0, %s42
      %s45 = sadd.s32 1, %s34
      %s46 = scalar_select %p43, %s45, %s34
      %p47 = scmp.ge.s32.totalorder %s46, 1
      %s48 = scalar_select %p47, 0, %s46
      %s49 = sadd.s32 1, %s33
      %s50 = scalar_select %p47, %s49, %s33
      %p51 = scmp.ge.s32.totalorder %s50, 2
      %s52 = scalar_select %p51, 0, %s50
      %s53 = ssub.s32 %s33, %s52
      %s54 = ssub.s32 %s34, %s48
      %s55 = sor.u32 %s53, %s54
      %p56 = scmp.eq.s32.totalorder %s55, 0
      %s58 = sadd.s32 %s57, 1
      %s59 = scalar_select %p56, %s57, %s58
      %p62 = pneg %p56
      %p63 = scmp.eq.s32.totalorder %s26, 1
      %p64 = por %p62, %p63
      %p65 = scmp.ne.s32.totalorder %s57, %s60
      %p66 = scmp.eq.s32.totalorder %s26, 0
      %p67 = por %p65, %p66
      %p68 = scmp.ne.s32.totalorder %s57, %s60
      %p69 = scmp.eq.s32.totalorder %s31, 1
      %p70 = por %p68, %p69
      %p71 = scmp.ne.s32.totalorder %s60, %s61
      %p72 = scmp.eq.s32.totalorder %s31, 0
      %p73 = por %p71, %p72
      %p74 = scmp.ne.s32.totalorder %s60, %s61
      %p75 = scmp.eq.s32.totalorder %s32, 1
      %p76 = por %p74, %p75
      %p78 = scmp.ne.s32.totalorder %s61, %s77
      %p79 = scmp.eq.s32.totalorder %s32, 0
      %p80 = por %p78, %p79
      %s81 = ssub.s32 %s33, %s52
      %s82 = ssub.s32 %s35, %s44
      %s83 = sor.u32 %s81, %s82
      %p84 = scmp.eq.s32.totalorder %s83, 0
      %s86 = sadd.s32 %s85, 1
      %s87 = scalar_select %p84, %s85, %s86
      %p90 = pneg %p84
      %p91 = scmp.eq.s32.totalorder %s26, 1
      %p92 = por %p90, %p91
      %p93 = scmp.ne.s32.totalorder %s85, %s88
      %p94 = scmp.eq.s32.totalorder %s26, 0
      %p95 = por %p93, %p94
      %p96 = scmp.ne.s32.totalorder %s85, %s88
      %p97 = scmp.eq.s32.totalorder %s31, 1
      %p98 = por %p96, %p97
      %p99 = scmp.ne.s32.totalorder %s88, %s89
      %p100 = scmp.eq.s32.totalorder %s31, 0
      %p101 = por %p99, %p100
      %p102 = scmp.ne.s32.totalorder %s88, %s89
      %p103 = scmp.eq.s32.totalorder %s32, 1
      %p104 = por %p102, %p103
      %p106 = scmp.ne.s32.totalorder %s89, %s105
      %p107 = scmp.eq.s32.totalorder %s32, 0
      %p108 = por %p106, %p107
      %s110 = sadd.s32 %s109, 1
      %p113 = scmp.eq.s32.totalorder %s26, 1
      %p114 = scmp.ne.s32.totalorder %s109, %s111
      %p115 = scmp.eq.s32.totalorder %s26, 0
      %p116 = por %p114, %p115
      %p117 = scmp.ne.s32.totalorder %s109, %s111
      %p118 = scmp.eq.s32.totalorder %s31, 1
      %p119 = por %p117, %p118
      %p120 = scmp.ne.s32.totalorder %s111, %s112
      %p121 = scmp.eq.s32.totalorder %s31, 0
      %p122 = por %p120, %p121
      %p123 = scmp.ne.s32.totalorder %s111, %s112
      %p124 = scmp.eq.s32.totalorder %s32, 1
      %p125 = por %p123, %p124
      %p127 = scmp.ne.s32.totalorder %s112, %s126
      %p128 = scmp.eq.s32.totalorder %s32, 0
      %p129 = por %p127, %p128
      %s131 = sadd.s32 %s130, 1
      %p134 = scmp.eq.s32.totalorder %s26, 1
      %p135 = scmp.ne.s32.totalorder %s130, %s132
      %p136 = scmp.eq.s32.totalorder %s26, 0
      %p137 = por %p135, %p136
      %p138 = scmp.ne.s32.totalorder %s130, %s132
      %p139 = scmp.eq.s32.totalorder %s31, 1
      %p140 = por %p138, %p139
      %p141 = scmp.ne.s32.totalorder %s132, %s133
      %p142 = scmp.eq.s32.totalorder %s31, 0
      %p143 = por %p141, %p142
      %p144 = scmp.ne.s32.totalorder %s132, %s133
      %p145 = scmp.eq.s32.totalorder %s32, 1
      %p146 = por %p144, %p145
      %p148 = scmp.ne.s32.totalorder %s133, %s147
      %p149 = scmp.eq.s32.totalorder %s32, 0
      %p150 = por %p148, %p149
      %s152 = sadd.s32 %s151, 1
      %p155 = scmp.eq.s32.totalorder %s26, 1
      %p156 = scmp.ne.s32.totalorder %s151, %s153
      %p157 = scmp.eq.s32.totalorder %s26, 0
      %p158 = por %p156, %p157
      %p159 = scmp.ne.s32.totalorder %s151, %s153
      %p160 = scmp.eq.s32.totalorder %s31, 1
      %p161 = por %p159, %p160
      %p162 = scmp.ne.s32.totalorder %s153, %s154
      %p163 = scmp.eq.s32.totalorder %s31, 0
      %p164 = por %p162, %p163
      %p165 = scmp.ne.s32.totalorder %s153, %s154
      %p166 = scmp.eq.s32.totalorder %s32, 1
      %p167 = por %p165, %p166
      %p169 = scmp.ne.s32.totalorder %s154, %s168
      %p170 = scmp.eq.s32.totalorder %s32, 0
      %p171 = por %p169, %p170
      %s173 = sadd.s32 %s172, 1
      %p176 = scmp.eq.s32.totalorder %s26, 1
      %p177 = scmp.ne.s32.totalorder %s172, %s174
      %p178 = scmp.eq.s32.totalorder %s26, 0
      %p179 = por %p177, %p178
      %p180 = scmp.ne.s32.totalorder %s172, %s174
      %p181 = scmp.eq.s32.totalorder %s31, 1
      %p182 = por %p180, %p181
      %p183 = scmp.ne.s32.totalorder %s174, %s175
      %p184 = scmp.eq.s32.totalorder %s31, 0
      %p185 = por %p183, %p184
      %p186 = scmp.ne.s32.totalorder %s174, %s175
      %p187 = scmp.eq.s32.totalorder %s32, 1
      %p188 = por %p186, %p187
      %p190 = scmp.ne.s32.totalorder %s175, %s189
      %p191 = scmp.eq.s32.totalorder %s32, 0
      %p192 = por %p190, %p191
      %s193 = ssub.s32 %s33, %s52
      %s194 = ssub.s32 %s34, %s48
      %s195 = sor.u32 %s193, %s194
      %p196 = scmp.eq.s32.totalorder %s195, 0
      %s198 = sadd.s32 %s197, 1
      %s199 = scalar_select %p196, %s197, %s198
      %p202 = pneg %p196
      %p203 = scmp.eq.s32.totalorder %s26, 1
      %p204 = por %p202, %p203
      %p205 = scmp.ne.s32.totalorder %s197, %s200
      %p206 = scmp.eq.s32.totalorder %s26, 0
      %p207 = por %p205, %p206
      %p208 = scmp.ne.s32.totalorder %s197, %s200
      %p209 = scmp.eq.s32.totalorder %s31, 1
      %p210 = por %p208, %p209
      %p211 = scmp.ne.s32.totalorder %s200, %s201
      %p212 = scmp.eq.s32.totalorder %s31, 0
      %p213 = por %p211, %p212
      %p214 = scmp.ne.s32.totalorder %s200, %s201
      %p215 = scmp.eq.s32.totalorder %s32, 1
      %p216 = por %p214, %p215
      %p218 = scmp.ne.s32.totalorder %s201, %s217
      %p219 = scmp.eq.s32.totalorder %s32, 0
      %p220 = por %p218, %p219
      %p221 = scmp.le.s32.totalorder 1, %s26
      %p222 = scmp.lt.s32.totalorder %s26, 3
      %p223 = pnand %p221, %p222
      %p224 = pneg %p223
      // Predicated region
      $region9: #{tpu_custom_call.1} parent=5 // pred_check
        _
      $region10: #{tpu_custom_call.1} parent=5 // pred_check_branch
        %226 = sbr.rel (%p223) target = $region12
      $region11: #{tpu_custom_call.1} parent=5 // pred_region
        %s227 = ssub.s32 %s26, 1
        // Predicated region
        $region13: #{tpu_custom_call.1} parent=11 // pred_check
          %p228 = pneg %p122
        $region14: #{tpu_custom_call.1} parent=11 // pred_check_branch
          %230 = sbr.rel (%p228) target = $region16
        $region15: #{tpu_custom_call.1} parent=11 // pred_region
          %s232 = ssub.s32 256, 256
          %233 = vsyncadd [#allocation12], %s232
          %s234 = sshll.u32 [#allocation13], 4
          %s235 = int_to_ptr.vmem [resolvable:$true] %s234
          %240 = dma.hbm_to_vmem [thread:$0]  %s3, 256, %s235, [#allocation12], 64, 64, 4
        $region16: #{tpu_custom_call.1} parent=11 // pred_fallthru
          _
        // Predicated region
        $region17: #{tpu_custom_call.1} parent=11 // pred_check
          %p241 = pneg %p143
        $region18: #{tpu_custom_call.1} parent=11 // pred_check_branch
          %243 = sbr.rel (%p241) target = $region20
        $region19: #{tpu_custom_call.1} parent=11 // pred_region
          _
        $region20: #{tpu_custom_call.1} parent=11 // pred_fallthru
          _
        // Predicated region
        $region21: #{tpu_custom_call.1} parent=11 // pred_check
          %p244 = pneg %p164
        $region22: #{tpu_custom_call.1} parent=11 // pred_check_branch
          %246 = sbr.rel (%p244) target = $region24
        $region23: #{tpu_custom_call.1} parent=11 // pred_region
          _
        $region24: #{tpu_custom_call.1} parent=11 // pred_fallthru
          _
        // Predicated region
        $region25: #{tpu_custom_call.1} parent=11 // pred_check
          %p247 = pneg %p185
        $region26: #{tpu_custom_call.1} parent=11 // pred_check_branch
          %249 = sbr.rel (%p247) target = $region28
        $region27: #{tpu_custom_call.1} parent=11 // pred_region
          _
        $region28: #{tpu_custom_call.1} parent=11 // pred_fallthru
          _
      $region12: #{tpu_custom_call.1} parent=5 // pred_fallthru
        _
      %p250 = scmp.lt.s32.totalorder %s26, 2
      // Predicated region
      $region29: #{tpu_custom_call.1} parent=5 // pred_check
        %p251 = pneg %p250
      $region30: #{tpu_custom_call.1} parent=5 // pred_check_branch
        %253 = sbr.rel (%p251) target = $region32
      $region31: #{tpu_custom_call.1} parent=5 // pred_region
        // Predicated region
        $region33: #{tpu_custom_call.1} parent=31 // pred_check
          %p254 = pneg %p67
        $region34: #{tpu_custom_call.1} parent=31 // pred_check_branch
          %256 = sbr.rel (%p254) target = $region36
        $region35: #{tpu_custom_call.1} parent=31 // pred_region
          %s257 = sand.u32 %s57, 1
          %s258 = scalar_lea.sflag [#allocation9], %s257
          %s259 = sand.u32 %s57, 1
          %s260 = smul.addr %s259, 4
          %s261 = scalar_lea.vmem [#allocation8], %s260
          %s263 = ssub.s32 64, 64
          %264 = vsyncadd %s258, %s263
          %s265 = sadd.s32 %s34, %s33
          %s266 = smul.addr %s265, 64
          %s267 = scalar_lea.hbm %s1, %s266
          %s269 = sshll.u32 %s261, 4
          %s270 = int_to_ptr.vmem [resolvable:$true] %s269
          %272 = dma.hbm_to_vmem [thread:$0]  %s267, 64, %s270, %s258
        $region36: #{tpu_custom_call.1} parent=31 // pred_fallthru
          _
        // Predicated region
        $region37: #{tpu_custom_call.1} parent=31 // pred_check
          %p273 = pneg %p95
        $region38: #{tpu_custom_call.1} parent=31 // pred_check_branch
          %275 = sbr.rel (%p273) target = $region40
        $region39: #{tpu_custom_call.1} parent=31 // pred_region
          %s276 = sand.u32 %s26, 1
          %s277 = scalar_lea.sflag [#allocation12], %s276
          %s278 = sand.u32 %s85, 1
          %s279 = smul.addr %s278, 4
          %s280 = scalar_lea.vmem [#allocation11], %s279
          %s282 = ssub.s32 64, 64
          %283 = vsyncadd %s277, %s282
          %s284 = sadd.s32 %s35, %s33
          %s285 = smul.addr %s284, 64
          %s286 = scalar_lea.hbm %s2, %s285
          %s288 = sshll.u32 %s280, 4
          %s289 = int_to_ptr.vmem [resolvable:$true] %s288
          %291 = dma.hbm_to_vmem [thread:$0]  %s286, 64, %s289, %s277
        $region40: #{tpu_custom_call.1} parent=31 // pred_fallthru
          _
      $region32: #{tpu_custom_call.1} parent=5 // pred_fallthru
        _
      %p292 = scmp.le.s32.totalorder 1, %s26
      %p293 = scmp.lt.s32.totalorder %s26, 3
      %p294 = pnand %p292, %p293
      %p295 = pneg %p294
      // Predicated region
      $region41: #{tpu_custom_call.1} parent=5 // pred_check
        _
      $region42: #{tpu_custom_call.1} parent=5 // pred_check_branch
        %297 = sbr.rel (%p294) target = $region44
      $region43: #{tpu_custom_call.1} parent=5 // pred_region
        %s298 = ssub.s32 %s26, 1
        %s299 = sand.u32 %s60, 1
        %s300 = scalar_lea.sflag [#allocation9], %s299
        %s301 = sand.u32 %s60, 1
        %s302 = smul.addr %s301, 4
        %s303 = scalar_lea.vmem [#allocation8], %s302
        // Predicated region
        $region45: #{tpu_custom_call.1} parent=43 // pred_check
          %p304 = pneg %p73
        $region46: #{tpu_custom_call.1} parent=43 // pred_check_branch
          %306 = sbr.rel (%p304) target = $region48
        $region47: #{tpu_custom_call.1} parent=43 // pred_region
          %307 = dma.done %s300, 64
        $region48: #{tpu_custom_call.1} parent=43 // pred_fallthru
          _
        %s308 = sand.u32 %s31, 1
        %s309 = scalar_lea.sflag [#allocation12], %s308
        %s310 = sand.u32 %s88, 1
        %s311 = smul.addr %s310, 4
        %s312 = scalar_lea.vmem [#allocation11], %s311
        // Predicated region
        $region49: #{tpu_custom_call.1} parent=43 // pred_check
          %p313 = pneg %p101
        $region50: #{tpu_custom_call.1} parent=43 // pred_check_branch
          %315 = sbr.rel (%p313) target = $region52
        $region51: #{tpu_custom_call.1} parent=43 // pred_region
          %316 = dma.done %s309, 64
        $region52: #{tpu_custom_call.1} parent=43 // pred_fallthru
          _
        // Predicated region
        $region53: #{tpu_custom_call.1} parent=43 // pred_check
          %p317 = pneg %p122
        $region54: #{tpu_custom_call.1} parent=43 // pred_check_branch
          %319 = sbr.rel (%p317) target = $region56
        $region55: #{tpu_custom_call.1} parent=43 // pred_region
          %320 = dma.done [#allocation12], 256
        $region56: #{tpu_custom_call.1} parent=43 // pred_fallthru
          _
        %s321 = sand.u32 %s60, 1
        %s322 = scalar_lea.sflag [#allocation9], %s321
        %s323 = sand.u32 %s60, 1
        %s324 = smul.addr %s323, 4
        %s325 = scalar_lea.vmem [#allocation8], %s324
        %p326 = pneg %p73
        %p327 = pneg %p70
        %s328 = sand.u32 %s31, 1
        %s329 = scalar_lea.sflag [#allocation12], %s328
        %s330 = sand.u32 %s88, 1
        %s331 = smul.addr %s330, 4
        %s332 = scalar_lea.vmem [#allocation11], %s331
        %p333 = pneg %p101
        %p334 = pneg %p98
        %p335 = pneg %p122
        %p336 = pneg %p119
        %p337 = pneg %p143
        %p338 = pneg %p140
        %p339 = pneg %p164
        %p340 = pneg %p161
        %p341 = pneg %p185
        %p342 = pneg %p182
        %p343 = pneg %p213
        %p344 = pneg %p210
        %s345 = sand.u32 %s200, 1
        %s346 = scalar_lea.sflag [#allocation10], %s345
        %s347 = sand.u32 %s200, 1
        %s348 = smul.addr %s347, 8
        %s349 = scalar_lea.vmem [#allocation14], %s348
        %s351 = sld [smem:[#allocation7 + %s36]]
        %p352 = scmp.eq.s32.totalorder %s38, 0
        // Predicated region
        $region57: #{tpu_custom_call.1} parent=43 // pred_check
          %p353 = pneg %p352
        $region58: #{tpu_custom_call.1} parent=43 // pred_check_branch
          %355 = sbr.rel (%p353) target = $region60
        $region59: #{tpu_custom_call.1} parent=43 // pred_region
          %v356 = vld [vmem:[%s303] sm:$0xf]
          %v357 = vld [vmem:[#allocation13] sm:$0xf]
          %v358 = vld [vmem:[#allocation13 + $0x4] sm:$0xf]
          %v359 = vld [vmem:[#allocation13 + $0x8] sm:$0xf]
          %v360 = vld [vmem:[#allocation13 + $0xc] sm:$0xf]
          %v361 = vld [vmem:[%s4] sm:$0x1]
          %v363 = vlaneseq
          %v364 = vshrl.u32 %v363, 7
          %v365 = vsub.s32 0, %v364
          %v366 = vrot.slane %v361, %v365
          %v372 = vunpack.c.l.b16 %v357
          %v373 = vunpack.c.l.b16 %v358
          %v374 = vunpack.c.l.b16 %v359
          %v375 = vunpack.c.l.b16 %v360
          %v376 = vpack.c.b16 %v373, %v372
          %v377 = vpack.c.b16 %v375, %v374
          %vm380 = vcmask 261120
          %v382 = vsel %vm380, %v356, 0
          %384 = vmatprep.subr.bf16.mxu0 0
          %385 = vmatpush1.bf16.msra.mxu0 %v376
          %386 = vmatprep.subr.bf16.mxu0 0
          %387 = vmatpush1.bf16.msra.mxu0 %v377
          %388 = vmatprep.subr.bf16.mxu0 0
          %389 = vmatpush1.bf16.msra.mxu0 0
          %390 = vmatprep.subr.bf16.mxu0 0
          %391 = vmatpush1.bf16.msra.mxu0 0
          %392 = vmatprep.subr.bf16.mxu0 0
          %393 = vmatpush1.bf16.msra.mxu0 0
          %394 = vmatprep.subr.bf16.mxu0 0
          %395 = vmatpush1.bf16.msra.mxu0 0
          %396 = vmatprep.subr.bf16.mxu0 0
          %397 = vmatpush1.bf16.msra.mxu0 0
          %398 = vmatprep.subr.bf16.mxu0 0
          %399 = vmatpush1.bf16.msra.mxu0 0
          %400 = vmatprep.subr.bf16.mxu0 0
          %401 = vmatpush1.bf16.msra.mxu0 0
          %402 = vmatprep.subr.bf16.mxu0 0
          %403 = vmatpush1.bf16.msra.mxu0 0
          %404 = vmatprep.subr.bf16.mxu0 0
          %405 = vmatpush1.bf16.msra.mxu0 0
          %406 = vmatprep.subr.bf16.mxu0 0
          %407 = vmatpush1.bf16.msra.mxu0 0
          %408 = vmatprep.subr.bf16.mxu0 0
          %409 = vmatpush1.bf16.msra.mxu0 0
          %410 = vmatprep.subr.bf16.mxu0 0
          %411 = vmatpush1.bf16.msra.mxu0 0
          %412 = vmatprep.subr.bf16.mxu0 0
          %413 = vmatpush1.bf16.msra.mxu0 0
          %414 = vmatprep.subr.bf16.mxu0 0
          %415 = vmatpush1.bf16.msra.mxu0 0
          %416 = vmatprep.mubr.bf16.mxu0 0
          %417 = vmatmul.mubr.bf16.gmra.mrb[0].mxu0 %v382
          %v418 = vpop.f32.mrb[0].mxu0
          %v419 = vadd.f32 %v366, %v418
          %v420 = vpop.f32.mrb[0].mxu0
          %v421 = vpop.f32.mrb[0].mxu0
          %v422 = vpop.f32.mrb[0].mxu0
          %423 = vdwg.mxu0
          %v424 = vpack.c.bf16 %v419, %v419
          %vm425 = vcmask 257024
          %426 = vst.msk [vmem:[#allocation2] sm:$0xf] %vm425, %v424
          %vm427 = vcmask 7168
          %428 = vst.msk [vmem:[#allocation3] sm:$0xff] %vm427, -inf
          %429 = vst.msk [vmem:[#allocation4] sm:$0xff] %vm427, 0.0
          %430 = vst.msk [vmem:[#allocation5] sm:$0xff] %vm380, 0.0
        $region60: #{tpu_custom_call.1} parent=43 // pred_fallthru
          _
        %v431 = vld [vmem:[%s312] sm:$0xf]
        %v432 = vld [vmem:[%s5] sm:$0xf]
        %v433 = vld [vmem:[%s5 + $0x4] sm:$0xf]
        %v434 = vld [vmem:[%s5 + $0x8] sm:$0xf]
        %v435 = vld [vmem:[%s5 + $0xc] sm:$0xf]
        %v436 = vld [vmem:[%s6] sm:$0x1]
        %v438 = vlaneseq
        %v439 = vshrl.u32 %v438, 7
        %v440 = vsub.s32 0, %v439
        %v441 = vrot.slane %v436, %v440
        %v447 = vunpack.c.l.b16 %v432
        %v448 = vunpack.c.l.b16 %v433
        %v449 = vunpack.c.l.b16 %v434
        %v450 = vunpack.c.l.b16 %v435
        %v451 = vpack.c.b16 %v448, %v447
        %v452 = vpack.c.b16 %v450, %v449
        %vm455 = vcmask 261120
        %v457 = vsel %vm455, %v431, 0
        %459 = vmatprep.subr.bf16.mxu0 0
        %460 = vmatpush1.bf16.msra.mxu0 %v451
        %461 = vmatprep.subr.bf16.mxu0 0
        %462 = vmatpush1.bf16.msra.mxu0 %v452
        %463 = vmatprep.subr.bf16.mxu0 0
        %464 = vmatpush1.bf16.msra.mxu0 0
        %465 = vmatprep.subr.bf16.mxu0 0
        %466 = vmatpush1.bf16.msra.mxu0 0
        %467 = vmatprep.subr.bf16.mxu0 0
        %468 = vmatpush1.bf16.msra.mxu0 0
        %469 = vmatprep.subr.bf16.mxu0 0
        %470 = vmatpush1.bf16.msra.mxu0 0
        %471 = vmatprep.subr.bf16.mxu0 0
        %472 = vmatpush1.bf16.msra.mxu0 0
        %473 = vmatprep.subr.bf16.mxu0 0
        %474 = vmatpush1.bf16.msra.mxu0 0
        %475 = vmatprep.subr.bf16.mxu0 0
        %476 = vmatpush1.bf16.msra.mxu0 0
        %477 = vmatprep.subr.bf16.mxu0 0
        %478 = vmatpush1.bf16.msra.mxu0 0
        %479 = vmatprep.subr.bf16.mxu0 0
        %480 = vmatpush1.bf16.msra.mxu0 0
        %481 = vmatprep.subr.bf16.mxu0 0
        %482 = vmatpush1.bf16.msra.mxu0 0
        %483 = vmatprep.subr.bf16.mxu0 0
        %484 = vmatpush1.bf16.msra.mxu0 0
        %485 = vmatprep.subr.bf16.mxu0 0
        %486 = vmatpush1.bf16.msra.mxu0 0
        %487 = vmatprep.subr.bf16.mxu0 0
        %488 = vmatpush1.bf16.msra.mxu0 0
        %489 = vmatprep.subr.bf16.mxu0 0
        %490 = vmatpush1.bf16.msra.mxu0 0
        %491 = vmatprep.mubr.bf16.mxu0 0
        %492 = vmatmul.mubr.bf16.gmra.mrb[0].mxu0 %v457
        %v493 = vpop.f32.mrb[0].mxu0
        %v494 = vadd.f32 %v441, %v493
        %v495 = vpop.f32.mrb[0].mxu0
        %v496 = vpop.f32.mrb[0].mxu0
        %v497 = vpop.f32.mrb[0].mxu0
        %498 = vdwg.mxu0
        %v499 = vpack.c.bf16 %v494, %v494
        %v500 = vld [vmem:[#allocation2] sm:$0xf]
        %v502 = vsel %vm455, %v500, 0
        %v505 = vsel %vm455, %v499, 0
        %507 = vmatprep.subr.bf16.mxu0 0
        %508 = vmatpush1.bf16.xpose.msra.mxu0 %v505
        %509 = vmatprep.subr.bf16.mxu0 0
        %510 = vmatpush1.bf16.xpose.msra.mxu0 0
        %511 = vmatprep.subr.bf16.mxu0 0
        %512 = vmatpush1.bf16.xpose.msra.mxu0 0
        %513 = vmatprep.subr.bf16.mxu0 0
        %514 = vmatpush1.bf16.xpose.msra.mxu0 0
        %515 = vmatprep.subr.bf16.mxu0 0
        %516 = vmatpush1.bf16.xpose.msra.mxu0 0
        %517 = vmatprep.subr.bf16.mxu0 0
        %518 = vmatpush1.bf16.xpose.msra.mxu0 0
        %519 = vmatprep.subr.bf16.mxu0 0
        %520 = vmatpush1.bf16.xpose.msra.mxu0 0
        %521 = vmatprep.subr.bf16.mxu0 0
        %522 = vmatpush1.bf16.xpose.msra.mxu0 0
        %523 = vmatprep.subr.bf16.mxu0 0
        %524 = vmatpush1.bf16.xpose.msra.mxu0 0
        %525 = vmatprep.subr.bf16.mxu0 0
        %526 = vmatpush1.bf16.xpose.msra.mxu0 0
        %527 = vmatprep.subr.bf16.mxu0 0
        %528 = vmatpush1.bf16.xpose.msra.mxu0 0
        %529 = vmatprep.subr.bf16.mxu0 0
        %530 = vmatpush1.bf16.xpose.msra.mxu0 0
        %531 = vmatprep.subr.bf16.mxu0 0
        %532 = vmatpush1.bf16.xpose.msra.mxu0 0
        %533 = vmatprep.subr.bf16.mxu0 0
        %534 = vmatpush1.bf16.xpose.msra.mxu0 0
        %535 = vmatprep.subr.bf16.mxu0 0
        %536 = vmatpush1.bf16.xpose.msra.mxu0 0
        %537 = vmatprep.subr.bf16.mxu0 0
        %538 = vmatpush1.bf16.xpose.msra.mxu0 0
        %539 = vmatprep.mubr.bf16.mxu0 0
        %540 = vmatmul.mubr.bf16.gmra.mrb[0].mxu0 %v502
        %v541 = vpop.f32.mrb[0].mxu0
        %v542 = vadd.f32 0.0, %v541
        %v543 = vpop.f32.mrb[0].mxu0
        %v544 = vpop.f32.mrb[0].mxu0
        %v545 = vpop.f32.mrb[0].mxu0
        %546 = vdwg.mxu0
        %s547 = smul.u32 %s37, 8
        %v548 = vlaneseq
        %v549 = vshrl.u32 %v548, 7
        %v550 = vstv %s547
        %v551 = vadd.s32 %v550, %v549
        %s552 = smul.u32 %s38, 8
        %v553 = vlaneseq
        %v554 = vand.u32 %v553, 127
        %v555 = vstv %s552
        %v556 = vadd.s32 %v555, %v554
        %v557 = vstv %s351
        %vm558 = vcmp.lt.s32.totalorder %v551, %v557
        %vm559 = vcmp.lt.s32.totalorder %v556, %v557
        %vm560 = vmand %vm558, %vm559
        %v561 = vsel %vm560, %v542, -1e+09
        %v562 = vld [vmem:[#allocation3] sm:$0xff]
        %vm563 = vcmask 64512
        %v564 = vsel %vm563, %v561, -inf
        %565 = vmax.xlane.f32.xlu0 %v564
        %v566 = vpop.xlane.xlu0 %565
        %v567 = vmax.f32 %v562, %v566
        %v568 = vsub.f32 %v562, %v567
        %v569 = vmul.f32 %v568, 1.442695
        %v570 = vpow.pop %v569
        %572 = vset.pattern.permute.xlu0 0
        %573 = vperm.xlu0 %572, %v567
        %v574 = vpop.permute.xlu0 %573
        %v576 = vsub.f32 %v561, %v574
        %v577 = vmul.f32 %v576, 1.442695
        %v578 = vpow.pop %v577
        %v579 = vld [vmem:[#allocation4] sm:$0xff]
        %v580 = vmul.f32 %v570, %v579
        %v581 = vsel %vm563, %v578, 0.0
        %582 = vadd.xlane.f32.xlu0 %v581
        %v583 = vpop.xlane.xlu0 %582
        %v584 = vadd.f32 %v580, %v583
        %vm585 = vcmask 7168
        %586 = vst.msk [vmem:[#allocation4] sm:$0xff] %vm585, %v584
        %v587 = vld [vmem:[#allocation5] sm:$0xff]
        %589 = vset.pattern.permute.xlu0 0
        %590 = vperm.xlu0 %589, %v570
        %v591 = vpop.permute.xlu0 %590
        %v593 = vmul.f32 %v591, %v587
        %v594 = vpack.c.bf16 %v578, %v578
        %596 = vrot.lane.b32.xlu0 %v499, 96
        %v597 = vpop.permute.xlu0 %596
        %v599 = vsel %vm563, %v594, 0
        %vm601 = vcmask 1043456
        %v603 = vsel %vm601, %v597, 0
        %605 = vmatprep.subr.bf16.mxu0 0
        %606 = vmatpush1.bf16.msra.mxu0 %v603
        %607 = vmatprep.subr.bf16.mxu0 0
        %608 = vmatpush1.bf16.msra.mxu0 0
        %609 = vmatprep.subr.bf16.mxu0 0
        %610 = vmatpush1.bf16.msra.mxu0 0
        %611 = vmatprep.subr.bf16.mxu0 0
        %612 = vmatpush1.bf16.msra.mxu0 0
        %613 = vmatprep.subr.bf16.mxu0 0
        %614 = vmatpush1.bf16.msra.mxu0 0
        %615 = vmatprep.subr.bf16.mxu0 0
        %616 = vmatpush1.bf16.msra.mxu0 0
        %617 = vmatprep.subr.bf16.mxu0 0
        %618 = vmatpush1.bf16.msra.mxu0 0
        %619 = vmatprep.subr.bf16.mxu0 0
        %620 = vmatpush1.bf16.msra.mxu0 0
        %621 = vmatprep.subr.bf16.mxu0 0
        %622 = vmatpush1.bf16.msra.mxu0 0
        %623 = vmatprep.subr.bf16.mxu0 0
        %624 = vmatpush1.bf16.msra.mxu0 0
        %625 = vmatprep.subr.bf16.mxu0 0
        %626 = vmatpush1.bf16.msra.mxu0 0
        %627 = vmatprep.subr.bf16.mxu0 0
        %628 = vmatpush1.bf16.msra.mxu0 0
        %629 = vmatprep.subr.bf16.mxu0 0
        %630 = vmatpush1.bf16.msra.mxu0 0
        %631 = vmatprep.subr.bf16.mxu0 0
        %632 = vmatpush1.bf16.msra.mxu0 0
        %633 = vmatprep.subr.bf16.mxu0 0
        %634 = vmatpush1.bf16.msra.mxu0 0
        %635 = vmatprep.subr.bf16.mxu0 0
        %636 = vmatpush1.bf16.msra.mxu0 0
        %637 = vmatprep.mubr.bf16.mxu0 0
        %638 = vmatmul.mubr.bf16.gmra.mrb[0].mxu0 %v599
        %v639 = vpop.f32.mrb[0].mxu0
        %v640 = vadd.f32 0.0, %v639
        %v641 = vpop.f32.mrb[0].mxu0
        %v642 = vpop.f32.mrb[0].mxu0
        %v643 = vpop.f32.mrb[0].mxu0
        %644 = vdwg.mxu0
        %v645 = vadd.f32 %v593, %v640
        %646 = vst.msk [vmem:[#allocation5] sm:$0xff] %vm455, %v645
        %647 = vst.msk [vmem:[#allocation3] sm:$0xff] %vm585, %v567
        // Predicated region
        $region61: #{tpu_custom_call.1} parent=43 // pred_check
          %p648 = pneg %p352
        $region62: #{tpu_custom_call.1} parent=43 // pred_check_branch
          %650 = sbr.rel (%p648) target = $region64
        $region63: #{tpu_custom_call.1} parent=43 // pred_region
          %v651 = vld [vmem:[#allocation5] sm:$0xff]
          %v652 = vld [vmem:[#allocation4] sm:$0xff]
          %v653 = vrcp.pop %v652
          %655 = vset.pattern.permute.xlu0 0
          %656 = vperm.xlu0 %655, %v653
          %v657 = vpop.permute.xlu0 %656
          %v659 = vmul.f32 %v651, %v657
          %660 = vst.msk [vmem:[%s349] sm:$0xff] %vm455, %v659
        $region64: #{tpu_custom_call.1} parent=43 // pred_fallthru
          _
        %s661 = sand.u32 %s200, 1
        %s662 = scalar_lea.sflag [#allocation10], %s661
        %s663 = sand.u32 %s200, 1
        %s664 = smul.addr %s663, 8
        %s665 = scalar_lea.vmem [#allocation14], %s664
        // Predicated region
        $region65: #{tpu_custom_call.1} parent=43 // pred_check
          %p666 = pneg %p210
        $region66: #{tpu_custom_call.1} parent=43 // pred_check_branch
          %668 = sbr.rel (%p666) target = $region68
        $region67: #{tpu_custom_call.1} parent=43 // pred_region
          %s670 = ssub.s32 128, 128
          %671 = vsyncadd %s662, %s670
          %s672 = sadd.s32 %s37, %s36
          %s673 = smul.addr %s672, 128
          %s674 = scalar_lea.hbm %s7, %s673
          %s676 = sshll.u32 %s665, 4
          %s677 = int_to_ptr.vmem [resolvable:$true] %s676
          %679 = dma.vmem_to_hbm [thread:$0]  %s677, 128, %s674, %s662
        $region68: #{tpu_custom_call.1} parent=43 // pred_fallthru
          _
      $region44: #{tpu_custom_call.1} parent=5 // pred_fallthru
        _
      %p680 = scmp.le.s32.totalorder 2, %s26
      // Predicated region
      $region69: #{tpu_custom_call.1} parent=5 // pred_check
        %p681 = pneg %p680
      $region70: #{tpu_custom_call.1} parent=5 // pred_check_branch
        %683 = sbr.rel (%p681) target = $region72
      $region71: #{tpu_custom_call.1} parent=5 // pred_region
        %s684 = ssub.s32 %s26, 2
        // Predicated region
        $region73: #{tpu_custom_call.1} parent=71 // pred_check
          %p685 = pneg %p216
        $region74: #{tpu_custom_call.1} parent=71 // pred_check_branch
          %687 = sbr.rel (%p685) target = $region76
        $region75: #{tpu_custom_call.1} parent=71 // pred_region
          %s688 = sand.u32 %s201, 1
          %s689 = scalar_lea.sflag [#allocation10], %s688
          %s690 = sand.u32 %s201, 1
          %s691 = smul.addr %s690, 8
          %s692 = scalar_lea.vmem [#allocation14], %s691
          %693 = dma.done %s689, 128
        $region76: #{tpu_custom_call.1} parent=71 // pred_fallthru
          _
      $region72: #{tpu_custom_call.1} parent=5 // pred_fallthru
        _
    $region6: #{tpu_custom_call.1} parent=1 // loop_footer
      %s30 = sadd.s32 1, %s26
    $region7: #{tpu_custom_call.1} parent=1 // loop_footer_branch
      %25 = sbr.rel target = $region3
    $region8: #{tpu_custom_call.1} parent=1 // loop_exit
      _
    %694 = vsyncpa [#allocation9], 1
    %s695 = scalar_lea.sflag [#allocation9], 1
    %696 = vsyncpa %s695, 1
    %697 = vsyncpa [#allocation12], 1
    %s698 = scalar_lea.sflag [#allocation12], 1
    %699 = vsyncpa %s698, 1
    %700 = vsyncpa [#allocation10], 1
    %s701 = scalar_lea.sflag [#allocation10], 1
    %702 = vsyncpa %s701, 1

</llo_original>
